<compile_context>
chip_gen: v7x
topology: tpu7x:2x2x1
jax: 0.10.0
libtpu: 0.0.40
codegen_flags: <defaults>
</compile_context>

<pallas_src>
import functools

import jax
import jax.numpy as jnp
from jax.experimental import pallas as pl
from jax.experimental.pallas import tpu as pltpu


def _ru(x, m):
    return (x + m - 1) // m * m


# ----------------------------------------------------------------------------- kernel
def _crfa_kernel(x_ref, wtoe_ref, wfa1_ref, wfa2_ref, w1_ref, w2_ref, bias_ref,
                 out_ref, *, CL, Lh, H, NCp):
    # x_ref: (S, C*Lp) bf16, flat layout ci*Lp + lp (padded conv input).
    xb = x_ref[...]

    # Consolidated bias block (f32): row 0 t1, 1 b_fa1, 2 b_fa2, 3 t2, 4 b2.
    b_all = bias_ref[...]
    t1 = b_all[0:1, :CL]
    b_fa1 = b_all[1:2, :Lh]
    b_fa2 = b_all[2:3, :CL]
    t2 = b_all[3:4, :H]
    b2 = b_all[4:5, :NCp]

    # ---- CRBlock: Toeplitz conv (+ folded BN1) + ReLU; Dropout1d = identity (eval)
    feat = jnp.maximum(
        jnp.dot(xb, wtoe_ref[...], preferred_element_type=jnp.float32) + t1,
        0.0)                                                    # (S, C*L) f32

    # ---- FABlock: cGAP folded into wfa1; gate replication folded into wfa2
    h = jnp.maximum(
        jnp.dot(feat.astype(jnp.bfloat16), wfa1_ref[...],
                preferred_element_type=jnp.float32) + b_fa1, 0.0)   # (S, Lh)
    s = jnp.dot(h.astype(jnp.bfloat16), wfa2_ref[...],
                preferred_element_type=jnp.float32) + b_fa2         # (S, C*L)
    gated = feat * jax.nn.sigmoid(s)                                # (S, C*L)

    # ---- classifier: Linear (+ folded BN2) + ReLU + Linear (padded) + LogSoftmax
    z = jnp.dot(gated.astype(jnp.bfloat16), w1_ref[...],
                preferred_element_type=jnp.float32) + t2            # (S, H)
    hid = jnp.maximum(z, 0.0)
    logits = jnp.dot(hid.astype(jnp.bfloat16), w2_ref[...],
                     preferred_element_type=jnp.float32) + b2       # (S, NCp)
    # padded lanes carry -1e30 bias -> exp underflows to 0, lse is exact
    m = jnp.max(logits, axis=-1, keepdims=True)
    lse = m + jnp.log(jnp.sum(jnp.exp(logits - m), axis=-1, keepdims=True))
    out_ref[...] = logits - lse                                     # log_softmax


# ----------------------------------------------------------------------------- weight prep (one-time)
def prepare_params(p, C, L):
    """One-time weight transforms, hoisted out of the per-call forward."""
    eps = 1e-5
    K = p['w_cr'].shape[-1]
    pad = K // 2
    Lp = L + 2 * pad
    H = p['w_fc1'].shape[0]
    NC = p['w_fc2'].shape[0]
    Lh = p['w_f'].shape[0]
    CL = C * L
    NCp = _ru(max(NC, 128), 128)                  # lane-dense output width

    # ---- CRBlock: Conv1d as Toeplitz matrix, BN1 (eval) folded into it ----
    s1 = p['bn1_gamma'] / jnp.sqrt(p['bn1_var'] + eps)          # (C,)
    t1c = s1 * (p['b_cr'] - p['bn1_mean']) + p['bn1_beta']      # (C,)
    lp_i = jnp.arange(Lp)[:, None]
    l_i = jnp.arange(L)[None, :]
    k_i = lp_i - l_i
    valid = (k_i >= 0) & (k_i < K)
    k_c = jnp.clip(k_i, 0, K - 1)
    w_g = p['w_cr'][:, :, k_c]                                  # (Co, Ci, Lp, L)
    w_g = jnp.where(valid[None, None], w_g, 0.0)
    w_toe = jnp.transpose(w_g, (1, 2, 0, 3)).reshape(C * Lp, CL)  # (Ci*Lp, Co*L)
    w_toe = w_toe * jnp.repeat(s1, L)[None, :]                  # fold BN1 scale
    t1 = jnp.repeat(t1c, L)                                     # (CL,)

    # ---- FABlock: cGAP folded into w_fa1; gate C-replication folded into w_fa2
    w_fa1 = jnp.tile(p['w_f'].T / C, (C, 1))                    # (CL, Lh)
    b_fa1 = p['b_f']                                            # (Lh,)
    w_fa2 = jnp.tile(p['w_s'].T, (1, C))                        # (Lh, CL)
    b_fa2 = jnp.tile(p['b_s'], C)                               # (CL,)

    # ---- classifier: BN2 folded into fc1; fc2 padded lane-dense ----
    s2 = p['bn2_gamma'] / jnp.sqrt(p['bn2_var'] + eps)          # (H,)
    w1 = p['w_fc1'].T * s2[None, :]                             # (CL, H)
    t2 = s2 * (p['b_fc1'] - p['bn2_mean']) + p['bn2_beta']      # (H,)
    w2 = jnp.zeros((H, NCp), jnp.float32).at[:, :NC].set(p['w_fc2'].T)
    b2 = jnp.full((NCp,), -1e30, jnp.float32).at[:NC].set(p['b_fc2'])

    # ---- one consolidated (8, maxw) f32 bias block ----
    maxw = _ru(max(CL, Lh, H, NCp), 128)
    bias = jnp.zeros((8, maxw), jnp.float32)
    bias = bias.at[0, :CL].set(t1)
    bias = bias.at[1, :Lh].set(b_fa1)
    bias = bias.at[2, :CL].set(b_fa2)
    bias = bias.at[3, :H].set(t2)
    bias = bias.at[4, :NCp].set(b2)

    bfd = jnp.bfloat16
    prep = dict(
        w_toe=w_toe.astype(bfd),
        w_fa1=w_fa1.astype(bfd),
        w_fa2=w_fa2.astype(bfd),
        w1=w1.astype(bfd),
        w2=w2.astype(bfd),
        bias=bias,
    )
    return prep, NC


# ----------------------------------------------------------------------------- forward
def crfa_static_forward(x, prep, *, nb_class):
    """x: (B, C, L) float32 (PyTorch NCW). Returns (B, nb_class) log-probs."""
    B, C, L = x.shape
    CLp = prep['w_toe'].shape[0]
    CL = prep['w_toe'].shape[1]
    Lh = prep['w_fa1'].shape[1]
    H = prep['w1'].shape[1]
    NCp = prep['w2'].shape[1]
    Lp = CLp // C
    pad = (Lp - L) // 2

    # ---- batch tiling: S = MXU row height (128) or whole 16-aligned batch ----
    B16 = max(16, _ru(B, 16))           # bf16 sublane packing
    if B16 <= 128:
        S, steps = B16, 1               # single grid step for small batches
    else:
        S = 128
        steps = pl.cdiv(B16, S)
    Bp = steps * S

    xp = jnp.pad(x, ((0, Bp - B), (0, 0), (pad, pad)))          # (Bp, C, Lp)
    x_flat = xp.reshape(Bp, CLp).astype(jnp.bfloat16)           # layout ci*Lp+lp

    const2 = lambda i: (0, 0)   # resident weights: constant index_map -> no re-DMA
    full = lambda a: pl.BlockSpec(a.shape, const2)

    kernel = functools.partial(_crfa_kernel, CL=CL, Lh=Lh, H=H, NCp=NCp)
    out = pl.pallas_call(
        kernel,
        out_shape=jax.ShapeDtypeStruct((Bp, NCp), jnp.float32),
        grid_spec=pltpu.PrefetchScalarGridSpec(
            num_scalar_prefetch=0,
            grid=(steps,),
            in_specs=[
                pl.BlockSpec((S, CLp), lambda i: (i, 0)),       # per-step samples
                full(prep['w_toe']), full(prep['w_fa1']), full(prep['w_fa2']),
                full(prep['w1']), full(prep['w2']), full(prep['bias']),
            ],
            out_specs=pl.BlockSpec((S, NCp), lambda i: (i, 0)),
        ),
        compiler_params=pltpu.CompilerParams(
            dimension_semantics=("parallel",) if steps > 1 else ("arbitrary",)),
    )(x_flat, prep['w_toe'], prep['w_fa1'], prep['w_fa2'],
      prep['w1'], prep['w2'], prep['bias'])
    return out[:B, :nb_class]


# ----------------------------------------------------------------------------- reference
def reference_static_forward(x, p):
    B, C, L = x.shape
    K = p['w_cr'].shape[-1]
    pad = K // 2
    eps = 1e-5
    xp = jnp.pad(x, ((0, 0), (0, 0), (pad, pad)))
    windows = jnp.stack([xp[:, :, k:k + L] for k in range(K)], axis=-1)  # (B,C,L,K)
    f = jnp.einsum('oik,bilk->bol', p['w_cr'], windows) + p['b_cr'][None, :, None]
    sc1 = p['bn1_gamma'] / jnp.sqrt(p['bn1_var'] + eps)
    f = (f - p['bn1_mean'][None, :, None]) * sc1[None, :, None] + p['bn1_beta'][None, :, None]
    f = jnp.maximum(f, 0.0)
    z = jnp.transpose(f, (0, 2, 1))                   # (B, L, C)
    g = jnp.mean(z, axis=-1)                          # (B, L)
    h = jnp.maximum(g @ p['w_f'].T + p['b_f'][None, :], 0.0)
    s = h @ p['w_s'].T + p['b_s'][None, :]
    z = z * jax.nn.sigmoid(s)[:, :, None]
    back = jnp.transpose(z, (0, 2, 1))                # (B, C, L)
    flat = back.reshape(B, C * L)
    z1 = flat @ p['w_fc1'].T + p['b_fc1'][None, :]
    sc2 = p['bn2_gamma'] / jnp.sqrt(p['bn2_var'] + eps)
    z1 = (z1 - p['bn2_mean'][None, :]) * sc2[None, :] + p['bn2_beta'][None, :]
    z1 = jnp.maximum(z1, 0.0)
    logits = z1 @ p['w_fc2'].T + p['b_fc2'][None, :]
    return jax.nn.log_softmax(logits, axis=1)


# ----------------------------------------------------------------------------- params
def init_params(key, C, L, K=9, nb_class=2, ratio=2, hidden=128):
    Lh = L // ratio
    ks = jax.random.split(key, 18)
    n = lambda k, shape, s=0.1: s * jax.random.normal(k, shape, jnp.float32)
    u = lambda k, shape: jax.random.uniform(k, shape, jnp.float32, 0.5, 1.5)
    return dict(
        w_cr=n(ks[0], (C, C, K)), b_cr=n(ks[1], (C,)),
        bn1_gamma=u(ks[2], (C,)), bn1_beta=n(ks[3], (C,)),
        bn1_mean=n(ks[4], (C,)), bn1_var=u(ks[5], (C,)),
        w_f=n(ks[6], (Lh, L)), b_f=n(ks[7], (Lh,)),
        w_s=n(ks[8], (L, Lh)), b_s=n(ks[9], (L,)),
        w_fc1=n(ks[10], (hidden, C * L), 0.05), b_fc1=n(ks[11], (hidden,), 0.05),
        bn2_gamma=u(ks[12], (hidden,)), bn2_beta=n(ks[13], (hidden,)),
        bn2_mean=n(ks[14], (hidden,)), bn2_var=u(ks[15], (hidden,)),
        w_fc2=n(ks[16], (nb_class, hidden)), b_fc2=n(ks[17], (nb_class,)),
    )


# ----------------------------------------------------------------------------- main
if __name__ == "__main__":
    B, C, L = 4, 8, 16          # batch, num_channels, num_points
    K, NC, ratio, H = 9, 2, 2, 128

    key = jax.random.PRNGKey(0)
    kx, kp = jax.random.split(key)
    x = jax.random.normal(kx, (B, C, L), jnp.float32)
    params = init_params(kp, C, L, K=K, nb_class=NC, ratio=ratio, hidden=H)

    # one-time weight prep (hoisted out of the per-call forward)
    prep, nb_class = prepare_params(params, C, L)
    prep = jax.tree_util.tree_map(jax.block_until_ready, prep)

    fwd = jax.jit(crfa_static_forward, static_argnames='nb_class')
    y = jax.block_until_ready(fwd(x, prep, nb_class=nb_class))
    assert y.shape == (B, NC)

    with jax.default_matmul_precision('float32'):
        y_ref = reference_static_forward(x, params)
    err = float(jnp.max(jnp.abs(y - y_ref)))
    # tolerance accounts for bf16 MXU operands vs f32 reference
    assert err < 5e-2, f"max abs err {err}"

    print("KERNEL_OK")
</pallas_src>

<mosaic_0001>
module attributes {stable_mosaic.version = 11 : i64} {
  func.func @_crfa_kernel(%arg0: i32, %arg1: memref<16x192xbf16, #tpu.memory_space<vmem>>, %arg2: memref<192x128xbf16, #tpu.memory_space<vmem>>, %arg3: memref<128x8xbf16, #tpu.memory_space<vmem>>, %arg4: memref<8x128xbf16, #tpu.memory_space<vmem>>, %arg5: memref<128x128xbf16, #tpu.memory_space<vmem>>, %arg6: memref<128x128xbf16, #tpu.memory_space<vmem>>, %arg7: memref<8x128xf32, #tpu.memory_space<vmem>>, %arg8: memref<16x128xf32, #tpu.memory_space<vmem>>) attributes {dimension_semantics = [#tpu.dimension_semantics<arbitrary>], iteration_bounds = array<i64: 1>, scalar_prefetch = 0 : i64, scratch_operands = 0 : i64, tpu.core_type = #tpu.core_type<tc>, window_params = [{transform_indices = @transform_0, window_bounds = array<i64: 16, 192>}, {pipeline_mode = #tpu.pipeline_mode<synchronous>, transform_indices = @transform_1, window_bounds = array<i64: 192, 128>}, {pipeline_mode = #tpu.pipeline_mode<synchronous>, transform_indices = @transform_2, window_bounds = array<i64: 128, 8>}, {pipeline_mode = #tpu.pipeline_mode<synchronous>, transform_indices = @transform_3, window_bounds = array<i64: 8, 128>}, {pipeline_mode = #tpu.pipeline_mode<synchronous>, transform_indices = @transform_4, window_bounds = array<i64: 128, 128>}, {pipeline_mode = #tpu.pipeline_mode<synchronous>, transform_indices = @transform_5, window_bounds = array<i64: 128, 128>}, {pipeline_mode = #tpu.pipeline_mode<synchronous>, transform_indices = @transform_6, window_bounds = array<i64: 8, 128>}, {transform_indices = @transform_7, window_bounds = array<i64: 16, 128>}]} {
    %c0 = arith.constant 0 : index
    %c0_0 = arith.constant 0 : index
    %0 = vector.load %arg1[%c0, %c0_0] : memref<16x192xbf16, #tpu.memory_space<vmem>>, vector<16x192xbf16>
    %c0_1 = arith.constant 0 : index
    %c0_2 = arith.constant 0 : index
    %1 = vector.load %arg7[%c0_1, %c0_2] : memref<8x128xf32, #tpu.memory_space<vmem>>, vector<8x128xf32>
    %2 = vector.extract_strided_slice %1 {offsets = [0, 0], sizes = [1, 128], strides = [1, 1]} : vector<8x128xf32> to vector<1x128xf32>
    %3 = vector.extract_strided_slice %1 {offsets = [1, 0], sizes = [1, 8], strides = [1, 1]} : vector<8x128xf32> to vector<1x8xf32>
    %4 = vector.extract_strided_slice %1 {offsets = [2, 0], sizes = [1, 128], strides = [1, 1]} : vector<8x128xf32> to vector<1x128xf32>
    %5 = vector.extract_strided_slice %1 {offsets = [3, 0], sizes = [1, 128], strides = [1, 1]} : vector<8x128xf32> to vector<1x128xf32>
    %6 = vector.extract_strided_slice %1 {offsets = [4, 0], sizes = [1, 128], strides = [1, 1]} : vector<8x128xf32> to vector<1x128xf32>
    %c0_3 = arith.constant 0 : index
    %c0_4 = arith.constant 0 : index
    %7 = vector.load %arg2[%c0_3, %c0_4] : memref<192x128xbf16, #tpu.memory_space<vmem>>, vector<192x128xbf16>
    %cst = arith.constant dense<0.000000e+00> : vector<16x128xf32>
    %8 = tpu.matmul %0, %7, %cst {dimension_numbers = #tpu.dot_dimension_numbers<[1], [0], [0], [1], [0, 0, 1, 1], [], []>} : vector<16x192xbf16>, vector<192x128xbf16>, vector<16x128xf32> -> vector<16x128xf32>
    %9 = vector.broadcast %2 : vector<1x128xf32> to vector<16x128xf32>
    %10 = arith.addf %8, %9 : vector<16x128xf32>
    %cst_5 = arith.constant 0.000000e+00 : f32
    %11 = vector.broadcast %cst_5 : f32 to vector<16x128xf32>
    %12 = arith.maximumf %10, %11 : vector<16x128xf32>
    %13 = arith.truncf %12 : vector<16x128xf32> to vector<16x128xbf16>
    %c0_6 = arith.constant 0 : index
    %c0_7 = arith.constant 0 : index
    %14 = vector.load %arg3[%c0_6, %c0_7] : memref<128x8xbf16, #tpu.memory_space<vmem>>, vector<128x8xbf16>
    %cst_8 = arith.constant dense<0.000000e+00> : vector<16x8xf32>
    %15 = tpu.matmul %13, %14, %cst_8 {dimension_numbers = #tpu.dot_dimension_numbers<[1], [0], [0], [1], [0, 0, 1, 1], [], []>} : vector<16x128xbf16>, vector<128x8xbf16>, vector<16x8xf32> -> vector<16x8xf32>
    %16 = vector.broadcast %3 : vector<1x8xf32> to vector<16x8xf32>
    %17 = arith.addf %15, %16 : vector<16x8xf32>
    %cst_9 = arith.constant 0.000000e+00 : f32
    %18 = vector.broadcast %cst_9 : f32 to vector<16x8xf32>
    %19 = arith.maximumf %17, %18 : vector<16x8xf32>
    %20 = arith.truncf %19 : vector<16x8xf32> to vector<16x8xbf16>
    %c0_10 = arith.constant 0 : index
    %c0_11 = arith.constant 0 : index
    %21 = vector.load %arg4[%c0_10, %c0_11] : memref<8x128xbf16, #tpu.memory_space<vmem>>, vector<8x128xbf16>
    %cst_12 = arith.constant dense<0.000000e+00> : vector<16x128xf32>
    %22 = tpu.matmul %20, %21, %cst_12 {dimension_numbers = #tpu.dot_dimension_numbers<[1], [0], [0], [1], [0, 0, 1, 1], [], []>} : vector<16x8xbf16>, vector<8x128xbf16>, vector<16x128xf32> -> vector<16x128xf32>
    %23 = vector.broadcast %4 : vector<1x128xf32> to vector<16x128xf32>
    %24 = arith.addf %22, %23 : vector<16x128xf32>
    %25 = arith.negf %24 : vector<16x128xf32>
    %26 = math.exp %25 : vector<16x128xf32>
    %cst_13 = arith.constant 1.000000e+00 : f32
    %27 = vector.broadcast %cst_13 : f32 to vector<16x128xf32>
    %28 = arith.addf %27, %26 : vector<16x128xf32>
    %29 = arith.divf %27, %28 : vector<16x128xf32>
    %30 = arith.mulf %12, %29 : vector<16x128xf32>
    %31 = arith.truncf %30 : vector<16x128xf32> to vector<16x128xbf16>
    %c0_14 = arith.constant 0 : index
    %c0_15 = arith.constant 0 : index
    %32 = vector.load %arg5[%c0_14, %c0_15] : memref<128x128xbf16, #tpu.memory_space<vmem>>, vector<128x128xbf16>
    %cst_16 = arith.constant dense<0.000000e+00> : vector<16x128xf32>
    %33 = tpu.matmul %31, %32, %cst_16 {dimension_numbers = #tpu.dot_dimension_numbers<[1], [0], [0], [1], [0, 0, 1, 1], [], []>} : vector<16x128xbf16>, vector<128x128xbf16>, vector<16x128xf32> -> vector<16x128xf32>
    %34 = vector.broadcast %5 : vector<1x128xf32> to vector<16x128xf32>
    %35 = arith.addf %33, %34 : vector<16x128xf32>
    %cst_17 = arith.constant 0.000000e+00 : f32
    %36 = vector.broadcast %cst_17 : f32 to vector<16x128xf32>
    %37 = arith.maximumf %35, %36 : vector<16x128xf32>
    %38 = arith.truncf %37 : vector<16x128xf32> to vector<16x128xbf16>
    %c0_18 = arith.constant 0 : index
    %c0_19 = arith.constant 0 : index
    %39 = vector.load %arg6[%c0_18, %c0_19] : memref<128x128xbf16, #tpu.memory_space<vmem>>, vector<128x128xbf16>
    %cst_20 = arith.constant dense<0.000000e+00> : vector<16x128xf32>
    %40 = tpu.matmul %38, %39, %cst_20 {dimension_numbers = #tpu.dot_dimension_numbers<[1], [0], [0], [1], [0, 0, 1, 1], [], []>} : vector<16x128xbf16>, vector<128x128xbf16>, vector<16x128xf32> -> vector<16x128xf32>
    %41 = vector.broadcast %6 : vector<1x128xf32> to vector<16x128xf32>
    %42 = arith.addf %40, %41 : vector<16x128xf32>
    %cst_21 = arith.constant dense<0xFF800000> : vector<16xf32>
    %43 = vector.multi_reduction <maximumf>, %42, %cst_21 [1] : vector<16x128xf32> to vector<16xf32>
    %44 = vector.shape_cast %43 : vector<16xf32> to vector<16x1xf32>
    %45 = vector.broadcast %44 : vector<16x1xf32> to vector<16x128xf32>
    %46 = arith.subf %42, %45 : vector<16x128xf32>
    %47 = math.exp %46 : vector<16x128xf32>
    %cst_22 = arith.constant dense<0.000000e+00> : vector<16xf32>
    %48 = vector.multi_reduction <add>, %47, %cst_22 [1] : vector<16x128xf32> to vector<16xf32>
    %49 = vector.shape_cast %48 : vector<16xf32> to vector<16x1xf32>
    %50 = math.log %49 : vector<16x1xf32>
    %51 = arith.addf %44, %50 : vector<16x1xf32>
    %52 = vector.broadcast %51 : vector<16x1xf32> to vector<16x128xf32>
    %53 = arith.subf %42, %52 : vector<16x128xf32>
    %c0_23 = arith.constant 0 : index
    %c0_24 = arith.constant 0 : index
    %54 = vector.load %arg8[%c0_23, %c0_24] : memref<16x128xf32, #tpu.memory_space<vmem>>, vector<16x128xf32>
    tpu.vector_store %arg8[%c0_23, %c0_24], %53 {strides = array<i32>} : memref<16x128xf32, #tpu.memory_space<vmem>>, vector<16x128xf32>,
    return
  }
  func.func @transform_0(%arg0: i32) -> (i32, i32) {
    %c0_i32 = arith.constant 0 : i32
    %c0_i32_0 = arith.constant 0 : i32
    return %arg0, %c0_i32 : i32, i32
  }
  func.func @transform_1(%arg0: i32) -> (i32, i32) {
    %c0_i32 = arith.constant 0 : i32
    %c0_i32_0 = arith.constant 0 : i32
    %c0_i32_1 = arith.constant 0 : i32
    return %c0_i32, %c0_i32_0 : i32, i32
  }
  func.func @transform_2(%arg0: i32) -> (i32, i32) {
    %c0_i32 = arith.constant 0 : i32
    %c0_i32_0 = arith.constant 0 : i32
    %c0_i32_1 = arith.constant 0 : i32
    return %c0_i32, %c0_i32_0 : i32, i32
  }
  func.func @transform_3(%arg0: i32) -> (i32, i32) {
    %c0_i32 = arith.constant 0 : i32
    %c0_i32_0 = arith.constant 0 : i32
    %c0_i32_1 = arith.constant 0 : i32
    return %c0_i32, %c0_i32_0 : i32, i32
  }
  func.func @transform_4(%arg0: i32) -> (i32, i32) {
    %c0_i32 = arith.constant 0 : i32
    %c0_i32_0 = arith.constant 0 : i32
    %c0_i32_1 = arith.constant 0 : i32
    return %c0_i32, %c0_i32_0 : i32, i32
  }
  func.func @transform_5(%arg0: i32) -> (i32, i32) {
    %c0_i32 = arith.constant 0 : i32
    %c0_i32_0 = arith.constant 0 : i32
    %c0_i32_1 = arith.constant 0 : i32
    return %c0_i32, %c0_i32_0 : i32, i32
  }
  func.func @transform_6(%arg0: i32) -> (i32, i32) {
    %c0_i32 = arith.constant 0 : i32
    %c0_i32_0 = arith.constant 0 : i32
    %c0_i32_1 = arith.constant 0 : i32
    return %c0_i32, %c0_i32_0 : i32, i32
  }
  func.func @transform_7(%arg0: i32) -> (i32, i32) {
    %c0_i32 = arith.constant 0 : i32
    %c0_i32_0 = arith.constant 0 : i32
    return %arg0, %c0_i32 : i32, i32
  }
}

</mosaic_0001>

<llo_original>
// kernel: crfa_static_forward.1
$region0: #{crfa_static_forward.1}
  #allocation0 [shape = 'u32[]', space=smem, size = 0x4, offset = 0x4, fixed_abs, tag = 'smem constant byte address 0x4 - core index']
  #allocation1 [shape = 'u32[144,128]{1,0:T(1,128)}', space=vmem, size = 0x12000, scoped, tag = 'internal scratch']
  %s0 = inlined_call_operand.vmem [shape: bf16[16,192], index: 0, kind: input, shape index: {}]
  %s1 = inlined_call_operand.vmem [shape: bf16[192,128], index: 1, kind: input, shape index: {}]
  %s2 = inlined_call_operand.vmem [shape: bf16[128,8], index: 2, kind: input, shape index: {}]
  %s3 = inlined_call_operand.vmem [shape: bf16[8,128], index: 3, kind: input, shape index: {}]
  %s4 = inlined_call_operand.vmem [shape: bf16[128,128], index: 4, kind: input, shape index: {}]
  %s5 = inlined_call_operand.vmem [shape: bf16[128,128], index: 5, kind: input, shape index: {}]
  %s6 = inlined_call_operand.vmem [shape: f32[8,128], index: 6, kind: input, shape index: {}]
  %s7 = inlined_call_operand.vmem [shape: f32[16,128], index: 7, kind: output, shape index: {}]
  %s8 = sld [smem:[#allocation0]]
  $region38: #{crfa_static_forward.1} parent=0
    _
  %s10 = ssub.s32 1, %s8
  %s11 = scalar_select 0, %s10, %s8
  // Predicated region
  $region2: #{crfa_static_forward.1} parent=0 // pred_check
    _
  $region3: #{crfa_static_forward.1} parent=0 // pred_check_branch
    %13 = sbr.rel (0) target = $region5
  $region4: #{crfa_static_forward.1} parent=0 // pred_region
    _
  $region5: #{crfa_static_forward.1} parent=0 // pred_fallthru
    _
  // Predicated region
  $region6: #{crfa_static_forward.1} parent=0 // pred_check
    _
  $region7: #{crfa_static_forward.1} parent=0 // pred_check_branch
    %15 = sbr.rel (0) target = $region9
  $region8: #{crfa_static_forward.1} parent=0 // pred_region
    _
  $region9: #{crfa_static_forward.1} parent=0 // pred_fallthru
    _
  // Predicated region
  $region10: #{crfa_static_forward.1} parent=0 // pred_check
    _
  $region11: #{crfa_static_forward.1} parent=0 // pred_check_branch
    %17 = sbr.rel (0) target = $region13
  $region12: #{crfa_static_forward.1} parent=0 // pred_region
    _
  $region13: #{crfa_static_forward.1} parent=0 // pred_fallthru
    _
  // Predicated region
  $region14: #{crfa_static_forward.1} parent=0 // pred_check
    _
  $region15: #{crfa_static_forward.1} parent=0 // pred_check_branch
    %19 = sbr.rel (0) target = $region17
  $region16: #{crfa_static_forward.1} parent=0 // pred_region
    _
  $region17: #{crfa_static_forward.1} parent=0 // pred_fallthru
    _
  // Predicated region
  $region18: #{crfa_static_forward.1} parent=0 // pred_check
    _
  $region19: #{crfa_static_forward.1} parent=0 // pred_check_branch
    %21 = sbr.rel (0) target = $region21
  $region20: #{crfa_static_forward.1} parent=0 // pred_region
    _
  $region21: #{crfa_static_forward.1} parent=0 // pred_fallthru
    _
  // Predicated region
  $region22: #{crfa_static_forward.1} parent=0 // pred_check
    _
  $region23: #{crfa_static_forward.1} parent=0 // pred_check_branch
    %23 = sbr.rel (0) target = $region25
  $region24: #{crfa_static_forward.1} parent=0 // pred_region
    _
  $region25: #{crfa_static_forward.1} parent=0 // pred_fallthru
    _
  // Predicated region
  $region26: #{crfa_static_forward.1} parent=0 // pred_check
    _
  $region27: #{crfa_static_forward.1} parent=0 // pred_check_branch
    %25 = sbr.rel (0) target = $region29
  $region28: #{crfa_static_forward.1} parent=0 // pred_region
    _
  $region29: #{crfa_static_forward.1} parent=0 // pred_fallthru
    _
  %v27 = vld [vmem:[%s0] sm:$0xff]
  %v28 = vld [vmem:[%s0 + $0x8] sm:$0xff]
  %v29 = vld [vmem:[%s6] sm:$0xff]
  %v30 = vld [vmem:[%s1] sm:$0xf]
  %v31 = vld [vmem:[%s1 + $0x4] sm:$0xf]
  %v32 = vld [vmem:[%s1 + $0x8] sm:$0xf]
  %v33 = vld [vmem:[%s1 + $0xc] sm:$0xf]
  %v34 = vld [vmem:[%s1 + $0x10] sm:$0xf]
  %v35 = vld [vmem:[%s1 + $0x14] sm:$0xf]
  %v36 = vld [vmem:[%s1 + $0x18] sm:$0xf]
  %v37 = vld [vmem:[%s1 + $0x1c] sm:$0xf]
  %v38 = vld [vmem:[%s1 + $0x20] sm:$0xf]
  %v39 = vld [vmem:[%s1 + $0x24] sm:$0xf]
  %v40 = vld [vmem:[%s1 + $0x28] sm:$0xf]
  %v41 = vld [vmem:[%s1 + $0x2c] sm:$0xf]
  %v42 = vld [vmem:[%s1 + $0x30] sm:$0xf]
  %v43 = vld [vmem:[%s1 + $0x34] sm:$0xf]
  %v44 = vld [vmem:[%s1 + $0x38] sm:$0xf]
  %v45 = vld [vmem:[%s1 + $0x3c] sm:$0xf]
  %v46 = vld [vmem:[%s1 + $0x40] sm:$0xf]
  %v47 = vld [vmem:[%s1 + $0x44] sm:$0xf]
  %v48 = vld [vmem:[%s1 + $0x48] sm:$0xf]
  %v49 = vld [vmem:[%s1 + $0x4c] sm:$0xf]
  %v50 = vld [vmem:[%s1 + $0x50] sm:$0xf]
  %v51 = vld [vmem:[%s1 + $0x54] sm:$0xf]
  %v52 = vld [vmem:[%s1 + $0x58] sm:$0xf]
  %v53 = vld [vmem:[%s1 + $0x5c] sm:$0xf]
  %v54 = vlaneseq
  %v55 = vshrl.u32 %v54, 7
  %v56 = vsub.s32 0, %v55
  %v57 = vrot.slane %v29, %v56
  %v60 = vunpack.c.l.b16 %v27
  %v61 = vunpack.c.h.b16 %v27
  %v62 = vunpack.c.l.b16 %v28
  %v63 = vunpack.c.h.b16 %v28
  %v64 = vpack.c.b16 %v62, %v60
  %v65 = vpack.c.b16 %v63, %v61
  %v91 = vunpack.c.l.b16 %v30
  %v92 = vunpack.c.l.b16 %v31
  %v93 = vunpack.c.l.b16 %v32
  %v94 = vunpack.c.l.b16 %v33
  %v95 = vunpack.c.l.b16 %v34
  %v96 = vunpack.c.l.b16 %v35
  %v97 = vunpack.c.l.b16 %v36
  %v98 = vunpack.c.l.b16 %v37
  %v99 = vunpack.c.l.b16 %v38
  %v100 = vunpack.c.l.b16 %v39
  %v101 = vunpack.c.l.b16 %v40
  %v102 = vunpack.c.l.b16 %v41
  %v103 = vunpack.c.l.b16 %v42
  %v104 = vunpack.c.l.b16 %v43
  %v105 = vunpack.c.l.b16 %v44
  %v106 = vunpack.c.l.b16 %v45
  %v107 = vunpack.c.l.b16 %v46
  %v108 = vunpack.c.l.b16 %v47
  %v109 = vunpack.c.l.b16 %v48
  %v110 = vunpack.c.l.b16 %v49
  %v111 = vunpack.c.l.b16 %v50
  %v112 = vunpack.c.l.b16 %v51
  %v113 = vunpack.c.l.b16 %v52
  %v114 = vunpack.c.l.b16 %v53
  %v115 = vpack.c.b16 %v92, %v91
  %v116 = vpack.c.b16 %v94, %v93
  %v117 = vpack.c.b16 %v96, %v95
  %v118 = vpack.c.b16 %v98, %v97
  %v119 = vpack.c.b16 %v100, %v99
  %v120 = vpack.c.b16 %v102, %v101
  %v121 = vpack.c.b16 %v104, %v103
  %v122 = vpack.c.b16 %v106, %v105
  %v123 = vpack.c.b16 %v108, %v107
  %v124 = vpack.c.b16 %v110, %v109
  %v125 = vpack.c.b16 %v112, %v111
  %v126 = vpack.c.b16 %v114, %v113
  %vm139 = vcmask 523264
  %v141 = vsel %vm139, %v65, 0
  %143 = vmatprep.subr.bf16.mxu0 0
  %144 = vmatpush1.bf16.msra.mxu0 %v115
  %145 = vmatprep.subr.bf16.mxu0 0
  %146 = vmatpush1.bf16.msra.mxu0 %v116
  %147 = vmatprep.subr.bf16.mxu0 0
  %148 = vmatpush1.bf16.msra.mxu0 %v117
  %149 = vmatprep.subr.bf16.mxu0 0
  %150 = vmatpush1.bf16.msra.mxu0 %v118
  %151 = vmatprep.subr.bf16.mxu0 0
  %152 = vmatpush1.bf16.msra.mxu0 %v119
  %153 = vmatprep.subr.bf16.mxu0 0
  %154 = vmatpush1.bf16.msra.mxu0 %v120
  %155 = vmatprep.subr.bf16.mxu0 0
  %156 = vmatpush1.bf16.msra.mxu0 %v121
  %157 = vmatprep.subr.bf16.mxu0 0
  %158 = vmatpush1.bf16.msra.mxu0 %v122
  %159 = vmatprep.subr.bf16.mxu0 0
  %160 = vmatpush1.bf16.msra.mxu0 %v123
  %161 = vmatprep.subr.bf16.mxu0 0
  %162 = vmatpush1.bf16.msra.mxu0 %v124
  %163 = vmatprep.subr.bf16.mxu0 0
  %164 = vmatpush1.bf16.msra.mxu0 %v125
  %165 = vmatprep.subr.bf16.mxu0 0
  %166 = vmatpush1.bf16.msra.mxu0 %v126
  %167 = vmatprep.subr.bf16.mxu0 0
  %168 = vmatpush1.bf16.msra.mxu0 0
  %169 = vmatprep.subr.bf16.mxu0 0
  %170 = vmatpush1.bf16.msra.mxu0 0
  %171 = vmatprep.subr.bf16.mxu0 0
  %172 = vmatpush1.bf16.msra.mxu0 0
  %173 = vmatprep.subr.bf16.mxu0 0
  %174 = vmatpush1.bf16.msra.mxu0 0
  %175 = vmatprep.mubr.bf16.mxu0 %v141
  %176 = vmatmul.mubr.bf16.gmra.mrb[0].mxu0 %v64
  %v177 = vpop.f32.mrb[0].mxu0
  %v178 = vadd.f32 %v57, %v177
  %v179 = vpop.f32.mrb[0].mxu0
  %v180 = vpop.f32.mrb[0].mxu0
  %v181 = vadd.f32 %v57, %v180
  %v182 = vpop.f32.mrb[0].mxu0
  %183 = vdwg.mxu0
  %v184 = vmax.f32 %v178, 0.0
  %v185 = vmax.f32 %v181, 0.0
  %v186 = vpack.c.bf16 %v185, %v184
  %v187 = vld [vmem:[%s2] sm:$0xf]
  %v188 = vld [vmem:[%s2 + $0x4] sm:$0xf]
  %v189 = vld [vmem:[%s2 + $0x8] sm:$0xf]
  %v190 = vld [vmem:[%s2 + $0xc] sm:$0xf]
  %v191 = vld [vmem:[%s2 + $0x10] sm:$0xf]
  %v192 = vld [vmem:[%s2 + $0x14] sm:$0xf]
  %v193 = vld [vmem:[%s2 + $0x18] sm:$0xf]
  %v194 = vld [vmem:[%s2 + $0x1c] sm:$0xf]
  %v195 = vld [vmem:[%s2 + $0x20] sm:$0xf]
  %v196 = vld [vmem:[%s2 + $0x24] sm:$0xf]
  %v197 = vld [vmem:[%s2 + $0x28] sm:$0xf]
  %v198 = vld [vmem:[%s2 + $0x2c] sm:$0xf]
  %v199 = vld [vmem:[%s2 + $0x30] sm:$0xf]
  %v200 = vld [vmem:[%s2 + $0x34] sm:$0xf]
  %v201 = vld [vmem:[%s2 + $0x38] sm:$0xf]
  %v202 = vld [vmem:[%s2 + $0x3c] sm:$0xf]
  %v203 = vlaneseq
  %v204 = vshrl.u32 %v203, 7
  %v205 = vsub.s32 1, %v204
  %v206 = vrot.slane %v29, %v205
  %v223 = vunpack.c.l.b16 %v187
  %v224 = vunpack.c.l.b16 %v188
  %v225 = vunpack.c.l.b16 %v189
  %v226 = vunpack.c.l.b16 %v190
  %v227 = vunpack.c.l.b16 %v191
  %v228 = vunpack.c.l.b16 %v192
  %v229 = vunpack.c.l.b16 %v193
  %v230 = vunpack.c.l.b16 %v194
  %v231 = vunpack.c.l.b16 %v195
  %v232 = vunpack.c.l.b16 %v196
  %v233 = vunpack.c.l.b16 %v197
  %v234 = vunpack.c.l.b16 %v198
  %v235 = vunpack.c.l.b16 %v199
  %v236 = vunpack.c.l.b16 %v200
  %v237 = vunpack.c.l.b16 %v201
  %v238 = vunpack.c.l.b16 %v202
  %v239 = vpack.c.b16 %v224, %v223
  %v240 = vpack.c.b16 %v226, %v225
  %v241 = vpack.c.b16 %v228, %v227
  %v242 = vpack.c.b16 %v230, %v229
  %v243 = vpack.c.b16 %v232, %v231
  %v244 = vpack.c.b16 %v234, %v233
  %v245 = vpack.c.b16 %v236, %v235
  %v246 = vpack.c.b16 %v238, %v237
  %255 = vmatprep.subr.bf16.mxu0 0
  %256 = vmatpush1.bf16.msra.mxu0 %v239
  %257 = vmatprep.subr.bf16.mxu0 0
  %258 = vmatpush1.bf16.msra.mxu0 %v240
  %259 = vmatprep.subr.bf16.mxu0 0
  %260 = vmatpush1.bf16.msra.mxu0 %v241
  %261 = vmatprep.subr.bf16.mxu0 0
  %262 = vmatpush1.bf16.msra.mxu0 %v242
  %263 = vmatprep.subr.bf16.mxu0 0
  %264 = vmatpush1.bf16.msra.mxu0 %v243
  %265 = vmatprep.subr.bf16.mxu0 0
  %266 = vmatpush1.bf16.msra.mxu0 %v244
  %267 = vmatprep.subr.bf16.mxu0 0
  %268 = vmatpush1.bf16.msra.mxu0 %v245
  %269 = vmatprep.subr.bf16.mxu0 0
  %270 = vmatpush1.bf16.msra.mxu0 %v246
  %271 = vmatprep.subr.bf16.mxu0 0
  %272 = vmatpush1.bf16.msra.mxu0 0
  %273 = vmatprep.subr.bf16.mxu0 0
  %274 = vmatpush1.bf16.msra.mxu0 0
  %275 = vmatprep.subr.bf16.mxu0 0
  %276 = vmatpush1.bf16.msra.mxu0 0
  %277 = vmatprep.subr.bf16.mxu0 0
  %278 = vmatpush1.bf16.msra.mxu0 0
  %279 = vmatprep.subr.bf16.mxu0 0
  %280 = vmatpush1.bf16.msra.mxu0 0
  %281 = vmatprep.subr.bf16.mxu0 0
  %282 = vmatpush1.bf16.msra.mxu0 0
  %283 = vmatprep.subr.bf16.mxu0 0
  %284 = vmatpush1.bf16.msra.mxu0 0
  %285 = vmatprep.subr.bf16.mxu0 0
  %286 = vmatpush1.bf16.msra.mxu0 0
  %287 = vmatprep.mubr.bf16.mxu0 0
  %288 = vmatmul.mubr.bf16.gmra.mrb[0].mxu0 %v186
  %v289 = vpop.f32.mrb[0].mxu0
  %v290 = vadd.f32 %v206, %v289
  %v291 = vpop.f32.mrb[0].mxu0
  %v292 = vpop.f32.mrb[0].mxu0
  %v293 = vadd.f32 %v206, %v292
  %v294 = vpop.f32.mrb[0].mxu0
  %295 = vdwg.mxu0
  %v296 = vmax.f32 %v290, 0.0
  %v297 = vmax.f32 %v293, 0.0
  %v298 = vpack.c.bf16 %v297, %v296
  %v299 = vld [vmem:[%s3] sm:$0xf]
  %v300 = vlaneseq
  %v301 = vshrl.u32 %v300, 7
  %v302 = vsub.s32 2, %v301
  %v303 = vrot.slane %v29, %v302
  %vm304 = vcmask 64512
  %v306 = vsel %vm304, %v298, 0
  %vm308 = vcmask 1043456
  %v310 = vsel %vm308, %v299, 0
  %312 = vmatprep.subr.bf16.mxu0 0
  %313 = vmatpush1.bf16.msra.mxu0 %v310
  %314 = vmatprep.subr.bf16.mxu0 0
  %315 = vmatpush1.bf16.msra.mxu0 0
  %316 = vmatprep.subr.bf16.mxu0 0
  %317 = vmatpush1.bf16.msra.mxu0 0
  %318 = vmatprep.subr.bf16.mxu0 0
  %319 = vmatpush1.bf16.msra.mxu0 0
  %320 = vmatprep.subr.bf16.mxu0 0
  %321 = vmatpush1.bf16.msra.mxu0 0
  %322 = vmatprep.subr.bf16.mxu0 0
  %323 = vmatpush1.bf16.msra.mxu0 0
  %324 = vmatprep.subr.bf16.mxu0 0
  %325 = vmatpush1.bf16.msra.mxu0 0
  %326 = vmatprep.subr.bf16.mxu0 0
  %327 = vmatpush1.bf16.msra.mxu0 0
  %328 = vmatprep.subr.bf16.mxu0 0
  %329 = vmatpush1.bf16.msra.mxu0 0
  %330 = vmatprep.subr.bf16.mxu0 0
  %331 = vmatpush1.bf16.msra.mxu0 0
  %332 = vmatprep.subr.bf16.mxu0 0
  %333 = vmatpush1.bf16.msra.mxu0 0
  %334 = vmatprep.subr.bf16.mxu0 0
  %335 = vmatpush1.bf16.msra.mxu0 0
  %336 = vmatprep.subr.bf16.mxu0 0
  %337 = vmatpush1.bf16.msra.mxu0 0
  %338 = vmatprep.subr.bf16.mxu0 0
  %339 = vmatpush1.bf16.msra.mxu0 0
  %340 = vmatprep.subr.bf16.mxu0 0
  %341 = vmatpush1.bf16.msra.mxu0 0
  %342 = vmatprep.subr.bf16.mxu0 0
  %343 = vmatpush1.bf16.msra.mxu0 0
  %344 = vmatprep.mubr.bf16.mxu0 0
  %345 = vmatmul.mubr.bf16.gmra.mrb[0].mxu0 %v306
  %v346 = vpop.f32.mrb[0].mxu0
  %v347 = vadd.f32 %v303, %v346
  %v348 = vpop.f32.mrb[0].mxu0
  %v349 = vpop.f32.mrb[0].mxu0
  %v350 = vadd.f32 %v303, %v349
  %v351 = vpop.f32.mrb[0].mxu0
  %352 = vdwg.mxu0
  %v353 = vxor.u32 %v347, 2147483648
  %v354 = vxor.u32 %v350, 2147483648
  %v355 = vmul.f32 %v353, 1.442695
  %v356 = vpow.pop %v355
  %v357 = vmul.f32 %v354, 1.442695
  %v358 = vpow.pop %v357
  %v359 = vadd.f32 %v356, 1.0
  %v360 = vadd.f32 %v358, 1.0
  %v361 = vrcp.pop %v359
  %v362 = vmul.f32 1.0, %v361
  %v363 = vrcp.pop %v360
  %v364 = vmul.f32 1.0, %v363
  %v365 = vmul.f32 %v184, %v362
  %v366 = vmul.f32 %v185, %v364
  %v367 = vpack.c.bf16 %v366, %v365
  %v368 = vld [vmem:[%s4] sm:$0xf]
  %v369 = vld [vmem:[%s4 + $0x4] sm:$0xf]
  %v370 = vld [vmem:[%s4 + $0x8] sm:$0xf]
  %v371 = vld [vmem:[%s4 + $0xc] sm:$0xf]
  %v372 = vld [vmem:[%s4 + $0x10] sm:$0xf]
  %v373 = vld [vmem:[%s4 + $0x14] sm:$0xf]
  %v374 = vld [vmem:[%s4 + $0x18] sm:$0xf]
  %v375 = vld [vmem:[%s4 + $0x1c] sm:$0xf]
  %v376 = vld [vmem:[%s4 + $0x20] sm:$0xf]
  %v377 = vld [vmem:[%s4 + $0x24] sm:$0xf]
  %v378 = vld [vmem:[%s4 + $0x28] sm:$0xf]
  %v379 = vld [vmem:[%s4 + $0x2c] sm:$0xf]
  %v380 = vld [vmem:[%s4 + $0x30] sm:$0xf]
  %v381 = vld [vmem:[%s4 + $0x34] sm:$0xf]
  %v382 = vld [vmem:[%s4 + $0x38] sm:$0xf]
  %v383 = vld [vmem:[%s4 + $0x3c] sm:$0xf]
  %v384 = vlaneseq
  %v385 = vshrl.u32 %v384, 7
  %v386 = vsub.s32 3, %v385
  %v387 = vrot.slane %v29, %v386
  %v404 = vunpack.c.l.b16 %v368
  %v405 = vunpack.c.l.b16 %v369
  %v406 = vunpack.c.l.b16 %v370
  %v407 = vunpack.c.l.b16 %v371
  %v408 = vunpack.c.l.b16 %v372
  %v409 = vunpack.c.l.b16 %v373
  %v410 = vunpack.c.l.b16 %v374
  %v411 = vunpack.c.l.b16 %v375
  %v412 = vunpack.c.l.b16 %v376
  %v413 = vunpack.c.l.b16 %v377
  %v414 = vunpack.c.l.b16 %v378
  %v415 = vunpack.c.l.b16 %v379
  %v416 = vunpack.c.l.b16 %v380
  %v417 = vunpack.c.l.b16 %v381
  %v418 = vunpack.c.l.b16 %v382
  %v419 = vunpack.c.l.b16 %v383
  %v420 = vpack.c.b16 %v405, %v404
  %v421 = vpack.c.b16 %v407, %v406
  %v422 = vpack.c.b16 %v409, %v408
  %v423 = vpack.c.b16 %v411, %v410
  %v424 = vpack.c.b16 %v413, %v412
  %v425 = vpack.c.b16 %v415, %v414
  %v426 = vpack.c.b16 %v417, %v416
  %v427 = vpack.c.b16 %v419, %v418
  %436 = vmatprep.subr.bf16.mxu0 0
  %437 = vmatpush1.bf16.msra.mxu0 %v420
  %438 = vmatprep.subr.bf16.mxu0 0
  %439 = vmatpush1.bf16.msra.mxu0 %v421
  %440 = vmatprep.subr.bf16.mxu0 0
  %441 = vmatpush1.bf16.msra.mxu0 %v422
  %442 = vmatprep.subr.bf16.mxu0 0
  %443 = vmatpush1.bf16.msra.mxu0 %v423
  %444 = vmatprep.subr.bf16.mxu0 0
  %445 = vmatpush1.bf16.msra.mxu0 %v424
  %446 = vmatprep.subr.bf16.mxu0 0
  %447 = vmatpush1.bf16.msra.mxu0 %v425
  %448 = vmatprep.subr.bf16.mxu0 0
  %449 = vmatpush1.bf16.msra.mxu0 %v426
  %450 = vmatprep.subr.bf16.mxu0 0
  %451 = vmatpush1.bf16.msra.mxu0 %v427
  %452 = vmatprep.subr.bf16.mxu0 0
  %453 = vmatpush1.bf16.msra.mxu0 0
  %454 = vmatprep.subr.bf16.mxu0 0
  %455 = vmatpush1.bf16.msra.mxu0 0
  %456 = vmatprep.subr.bf16.mxu0 0
  %457 = vmatpush1.bf16.msra.mxu0 0
  %458 = vmatprep.subr.bf16.mxu0 0
  %459 = vmatpush1.bf16.msra.mxu0 0
  %460 = vmatprep.subr.bf16.mxu0 0
  %461 = vmatpush1.bf16.msra.mxu0 0
  %462 = vmatprep.subr.bf16.mxu0 0
  %463 = vmatpush1.bf16.msra.mxu0 0
  %464 = vmatprep.subr.bf16.mxu0 0
  %465 = vmatpush1.bf16.msra.mxu0 0
  %466 = vmatprep.subr.bf16.mxu0 0
  %467 = vmatpush1.bf16.msra.mxu0 0
  %468 = vmatprep.mubr.bf16.mxu0 0
  %469 = vmatmul.mubr.bf16.gmra.mrb[0].mxu0 %v367
  %v470 = vpop.f32.mrb[0].mxu0
  %v471 = vadd.f32 %v387, %v470
  %v472 = vpop.f32.mrb[0].mxu0
  %v473 = vpop.f32.mrb[0].mxu0
  %v474 = vadd.f32 %v387, %v473
  %v475 = vpop.f32.mrb[0].mxu0
  %476 = vdwg.mxu0
  %v477 = vmax.f32 %v471, 0.0
  %v478 = vmax.f32 %v474, 0.0
  %v479 = vpack.c.bf16 %v478, %v477
  %v480 = vld [vmem:[%s5] sm:$0xf]
  %v481 = vld [vmem:[%s5 + $0x4] sm:$0xf]
  %v482 = vld [vmem:[%s5 + $0x8] sm:$0xf]
  %v483 = vld [vmem:[%s5 + $0xc] sm:$0xf]
  %v484 = vld [vmem:[%s5 + $0x10] sm:$0xf]
  %v485 = vld [vmem:[%s5 + $0x14] sm:$0xf]
  %v486 = vld [vmem:[%s5 + $0x18] sm:$0xf]
  %v487 = vld [vmem:[%s5 + $0x1c] sm:$0xf]
  %v488 = vld [vmem:[%s5 + $0x20] sm:$0xf]
  %v489 = vld [vmem:[%s5 + $0x24] sm:$0xf]
  %v490 = vld [vmem:[%s5 + $0x28] sm:$0xf]
  %v491 = vld [vmem:[%s5 + $0x2c] sm:$0xf]
  %v492 = vld [vmem:[%s5 + $0x30] sm:$0xf]
  %v493 = vld [vmem:[%s5 + $0x34] sm:$0xf]
  %v494 = vld [vmem:[%s5 + $0x38] sm:$0xf]
  %v495 = vld [vmem:[%s5 + $0x3c] sm:$0xf]
  %v496 = vlaneseq
  %v497 = vshrl.u32 %v496, 7
  %v498 = vsub.s32 4, %v497
  %v499 = vrot.slane %v29, %v498
  %v516 = vunpack.c.l.b16 %v480
  %v517 = vunpack.c.l.b16 %v481
  %v518 = vunpack.c.l.b16 %v482
  %v519 = vunpack.c.l.b16 %v483
  %v520 = vunpack.c.l.b16 %v484
  %v521 = vunpack.c.l.b16 %v485
  %v522 = vunpack.c.l.b16 %v486
  %v523 = vunpack.c.l.b16 %v487
  %v524 = vunpack.c.l.b16 %v488
  %v525 = vunpack.c.l.b16 %v489
  %v526 = vunpack.c.l.b16 %v490
  %v527 = vunpack.c.l.b16 %v491
  %v528 = vunpack.c.l.b16 %v492
  %v529 = vunpack.c.l.b16 %v493
  %v530 = vunpack.c.l.b16 %v494
  %v531 = vunpack.c.l.b16 %v495
  %v532 = vpack.c.b16 %v517, %v516
  %v533 = vpack.c.b16 %v519, %v518
  %v534 = vpack.c.b16 %v521, %v520
  %v535 = vpack.c.b16 %v523, %v522
  %v536 = vpack.c.b16 %v525, %v524
  %v537 = vpack.c.b16 %v527, %v526
  %v538 = vpack.c.b16 %v529, %v528
  %v539 = vpack.c.b16 %v531, %v530
  %548 = vmatprep.subr.bf16.mxu0 0
  %549 = vmatpush1.bf16.msra.mxu0 %v532
  %550 = vmatprep.subr.bf16.mxu0 0
  %551 = vmatpush1.bf16.msra.mxu0 %v533
  %552 = vmatprep.subr.bf16.mxu0 0
  %553 = vmatpush1.bf16.msra.mxu0 %v534
  %554 = vmatprep.subr.bf16.mxu0 0
  %555 = vmatpush1.bf16.msra.mxu0 %v535
  %556 = vmatprep.subr.bf16.mxu0 0
  %557 = vmatpush1.bf16.msra.mxu0 %v536
  %558 = vmatprep.subr.bf16.mxu0 0
  %559 = vmatpush1.bf16.msra.mxu0 %v537
  %560 = vmatprep.subr.bf16.mxu0 0
  %561 = vmatpush1.bf16.msra.mxu0 %v538
  %562 = vmatprep.subr.bf16.mxu0 0
  %563 = vmatpush1.bf16.msra.mxu0 %v539
  %564 = vmatprep.subr.bf16.mxu0 0
  %565 = vmatpush1.bf16.msra.mxu0 0
  %566 = vmatprep.subr.bf16.mxu0 0
  %567 = vmatpush1.bf16.msra.mxu0 0
  %568 = vmatprep.subr.bf16.mxu0 0
  %569 = vmatpush1.bf16.msra.mxu0 0
  %570 = vmatprep.subr.bf16.mxu0 0
  %571 = vmatpush1.bf16.msra.mxu0 0
  %572 = vmatprep.subr.bf16.mxu0 0
  %573 = vmatpush1.bf16.msra.mxu0 0
  %574 = vmatprep.subr.bf16.mxu0 0
  %575 = vmatpush1.bf16.msra.mxu0 0
  %576 = vmatprep.subr.bf16.mxu0 0
  %577 = vmatpush1.bf16.msra.mxu0 0
  %578 = vmatprep.subr.bf16.mxu0 0
  %579 = vmatpush1.bf16.msra.mxu0 0
  %580 = vmatprep.mubr.bf16.mxu0 0
  %581 = vmatmul.mubr.bf16.gmra.mrb[0].mxu0 %v479
  %v582 = vpop.f32.mrb[0].mxu0
  %v583 = vadd.f32 %v499, %v582
  %v584 = vpop.f32.mrb[0].mxu0
  %v585 = vpop.f32.mrb[0].mxu0
  %v586 = vadd.f32 %v499, %v585
  %v587 = vpop.f32.mrb[0].mxu0
  %588 = vdwg.mxu0
  %589 = vmax.xlane.f32.xlu0 %v583
  %v590 = vpop.xlane.xlu0 %589
  %591 = vmax.xlane.f32.xlu0 %v586
  %v592 = vpop.xlane.xlu0 %591
  %v593 = vsub.f32 %v583, %v590
  %v594 = vsub.f32 %v586, %v592
  %v595 = vmul.f32 %v593, 1.442695
  %v596 = vpow.pop %v595
  %v597 = vmul.f32 %v594, 1.442695
  %v598 = vpow.pop %v597
  %599 = vadd.xlane.f32.xlu0 %v596
  %v600 = vpop.xlane.xlu0 %599
  %601 = vadd.xlane.f32.xlu0 %v598
  %v602 = vpop.xlane.xlu0 %601
  %v603 = vlog2.pop %v600
  %v604 = vmul.f32 %v603, 0.6931472
  %v605 = vlog2.pop %v602
  %v606 = vmul.f32 %v605, 0.6931472
  %v607 = vadd.f32 %v590, %v604
  %v608 = vadd.f32 %v592, %v606
  %v609 = vsub.f32 %v583, %v607
  %v610 = vsub.f32 %v586, %v608
  %611 = vst [vmem:[%s7] sm:$0xff] %v609
  %612 = vst [vmem:[%s7 + $0x8] sm:$0xff] %v610
  // Predicated region
  $region30: #{crfa_static_forward.1} parent=0 // pred_check
    _
  $region31: #{crfa_static_forward.1} parent=0 // pred_check_branch
    %614 = sbr.rel (0) target = $region33
  $region32: #{crfa_static_forward.1} parent=0 // pred_region
    _
  $region33: #{crfa_static_forward.1} parent=0 // pred_fallthru
    _
  // Predicated region
  $region34: #{crfa_static_forward.1} parent=0 // pred_check
    _
  $region35: #{crfa_static_forward.1} parent=0 // pred_check_branch
    %616 = sbr.rel (0) target = $region37
  $region36: #{crfa_static_forward.1} parent=0 // pred_region
    _
  $region37: #{crfa_static_forward.1} parent=0 // pred_fallthru
    _

</llo_original>
